<compile_context>
chip_gen: v7x
topology: tpu7x:2x2x1
jax: 0.10.0
libtpu: 0.0.40
codegen_flags: <defaults>
</compile_context>

<pallas_src>
import functools

import jax
import jax.numpy as jnp
from jax.experimental import pallas as pl
from jax.experimental.pallas import tpu as pltpu


def _mlp_base_kernel(x_ref, tgt_ref, wct_ref, wh_ref, bh_ref, wo_ref, bo_ref,
                     loss_ref, l1_ref, wt_ref, *, seq_len, time_block, hidden):
    b = pl.program_id(0)
    nb = pl.num_programs(0)
    TB, N = x_ref.shape

    @pl.when(b == 0)
    def _init():
        loss_ref[...] = jnp.zeros_like(loss_ref)
        # L1 of the causal weight (sum|Wc.T| == sum|Wc|), computed once in-kernel.
        l1_ref[...] = jnp.sum(jnp.abs(wct_ref[...]), keepdims=True)
        # relu(Wc).T cached in VMEM scratch, reused by every time block.
        wt_ref[...] = jnp.maximum(wct_ref[...], 0.0)

    x = x_ref[...]                                     # (TB, N)  Input rows of this block
    wt = wt_ref[...]                                   # (N, N)   wt[j, i] = relu(Wc)[i, j]

    # Stack the hidden channels along the matmul M dimension:
    #   rows [k*TB, (k+1)*TB) hold  x * Wh[k, :]   (elementwise, VPU)
    # One MXU matmul then yields all hidden pre-activations:
    #   P[k*TB + t, i] = sum_j x[t, j] * relu(Wc)[i, j] * Wh[k, j]
    xs = jnp.concatenate([x * wh_ref[pl.ds(k, 1), :] for k in range(hidden)],
                         axis=0)                       # (hidden*TB, N)
    p = jnp.dot(xs, wt, preferred_element_type=jnp.float32)    # (hidden*TB, N)

    # VPU epilogue: relu, per-channel output weight, sum over channels, bias.
    out = jnp.zeros((TB, N), jnp.float32) + bo_ref[0]
    for k in range(hidden):
        hk = jnp.maximum(p[k * time_block:(k + 1) * time_block, :] + bh_ref[k], 0.0)
        out = out + hk * wo_ref[k]                     # (TB, N)  == Output rows of this block

    # Squared error against pre-shifted targets tgt[t] = Input[t+1].
    d = out - tgt_ref[...]
    block_start = b * time_block
    is_full = block_start + time_block <= seq_len - 1  # every row of this block is valid

    @pl.when(is_full)
    def _sum_full():
        loss_ref[...] += jnp.sum(d * d, keepdims=True)

    @pl.when(jnp.logical_not(is_full))
    def _sum_partial():
        # Rows t >= seq_len-1 (last output row + any zero padding) are masked out.
        row = jax.lax.broadcasted_iota(jnp.int32, (time_block, 1), 0) + block_start
        valid = (row < (seq_len - 1)).astype(jnp.float32)
        loss_ref[...] += jnp.sum(d * d * valid, keepdims=True)

    @pl.when(b == nb - 1)
    def _finalize():
        loss_ref[...] = loss_ref[...] * (1.0 / float((seq_len - 1) * N))


def init_params(key, N, hidden=6):
    """Deterministic parameter init. Shapes match MLP_base.__init__."""
    k = jax.random.split(key, 5)
    return {
        "causal_w": 0.5 * jax.random.normal(k[0], (N, N), jnp.float32),       # causal_layer.weight (no bias)
        "hidden_w": 0.3 * jax.random.normal(k[1], (hidden, N), jnp.float32),  # hidden_layer.weight
        "hidden_b": 0.1 * jax.random.normal(k[2], (hidden,), jnp.float32),    # hidden_layer.bias
        "out_w":    0.3 * jax.random.normal(k[3], (1, hidden), jnp.float32),  # output_layer.weight
        "out_b":    0.1 * jax.random.normal(k[4], (1,), jnp.float32),         # output_layer.bias
    }


def mlp_base_forward(x, params, *, max_time_block=512):
    """Returns (loss, l1), exactly like MLP_base.forward."""
    S, N = x.shape
    assert S >= 2, "need seq_len >= 2 so that Output[:-1] is non-empty"
    wc = params["causal_w"]
    wh = params["hidden_w"]
    H = wh.shape[0]

    # Time blocking: sublane-aligned (multiple-of-8) blocks; whole sequence in
    # one block when small. Padded rows are masked in-kernel.
    TB = min(8 * ((S + 7) // 8), max_time_block)
    S_pad = TB * ((S + TB - 1) // TB)
    nb = S_pad // TB

    xp = x if S_pad == S else jnp.pad(x, ((0, S_pad - S), (0, 0)))
    tgt = jnp.pad(x[1:], ((0, S_pad - (S - 1)), (0, 0)))            # tgt[t] = x[t+1]

    # Weight-layout glue (plain JAX): pre-transpose Wc so the kernel uses it
    # directly as the matmul RHS; flatten the small bias/output-weight vectors
    # for SMEM scalar access.
    wct = wc.T                                                      # (N, N)
    bh = params["hidden_b"].reshape(-1)                             # (H,)
    wo = params["out_w"].reshape(-1)                                # (H,)
    bo = params["out_b"].reshape(-1)                                # (1,)

    kernel = functools.partial(_mlp_base_kernel,
                               seq_len=S, time_block=TB, hidden=H)

    loss, l1 = pl.pallas_call(
        kernel,
        grid=(nb,),
        in_specs=[
            pl.BlockSpec((TB, N), lambda b: (b, 0)),                # Input block
            pl.BlockSpec((TB, N), lambda b: (b, 0)),                # shifted targets
            pl.BlockSpec((N, N), lambda b: (0, 0)),                 # Wc.T (resident)
            pl.BlockSpec((H, N), lambda b: (0, 0)),                 # Wh   (resident)
            pl.BlockSpec(memory_space=pltpu.MemorySpace.SMEM),      # bh scalars
            pl.BlockSpec(memory_space=pltpu.MemorySpace.SMEM),      # Wo scalars
            pl.BlockSpec(memory_space=pltpu.MemorySpace.SMEM),      # bo scalar
        ],
        out_specs=[
            pl.BlockSpec((1, 1), lambda b: (0, 0)),                 # loss accumulator
            pl.BlockSpec((1, 1), lambda b: (0, 0)),                 # l1
        ],
        out_shape=[
            jax.ShapeDtypeStruct((1, 1), jnp.float32),
            jax.ShapeDtypeStruct((1, 1), jnp.float32),
        ],
        scratch_shapes=[pltpu.VMEM((N, N), jnp.float32)],           # cached relu(Wc).T
        compiler_params=pltpu.CompilerParams(
            dimension_semantics=("arbitrary",)),                    # loss accumulates across time blocks
    )(xp, tgt, wct, wh, bh, wo, bo)

    return loss[0, 0], l1[0, 0]


def reference_forward(x, params):
    """Pure-JAX transcription of the PyTorch forward (for correctness check)."""
    S, N = x.shape
    wc = params["causal_w"]
    weight = jax.nn.relu(jnp.eye(N, dtype=x.dtype) @ wc.T)          # relu(causal_layer(I))
    cl = x[:, None, :] * weight.T[None, :, :]                       # (S, N, N)
    hd = jax.nn.relu(
        jnp.einsum('tij,hj->tih', cl, params["hidden_w"],
                   precision=jax.lax.Precision.HIGHEST) + params["hidden_b"])
    out = jnp.einsum('tih,oh->tio', hd, params["out_w"],
                     precision=jax.lax.Precision.HIGHEST)[..., 0] + params["out_b"][0]
    diff = out[:-1] - x[1:]
    loss = jnp.mean(diff * diff)
    l1 = jnp.sum(jnp.abs(wc))
    return loss, l1


if __name__ == "__main__":
    key = jax.random.PRNGKey(0)
    pkey, xkey = jax.random.split(key)

    # Small single-block case: node_num N=8, seq_len S=16.
    N, S = 8, 16
    params = init_params(pkey, N)
    x = jax.random.normal(xkey, (S, N), jnp.float32)

    loss, l1 = jax.block_until_ready(mlp_base_forward(x, params))
    ref_loss, ref_l1 = reference_forward(x, params)
    assert jnp.allclose(loss, ref_loss, rtol=1e-4, atol=1e-4), (float(loss), float(ref_loss))
    assert jnp.allclose(l1, ref_l1, rtol=1e-4, atol=1e-4), (float(l1), float(ref_l1))

    # Multi-block case: exercises cross-block loss accumulation and the
    # full-block / edge-masked pl.when paths.
    S2 = 48
    x2 = jax.random.normal(jax.random.fold_in(xkey, 1), (S2, N), jnp.float32)
    loss2, l12 = jax.block_until_ready(
        mlp_base_forward(x2, params, max_time_block=16))
    ref_loss2, ref_l12 = reference_forward(x2, params)
    assert jnp.allclose(loss2, ref_loss2, rtol=1e-4, atol=1e-4), (float(loss2), float(ref_loss2))
    assert jnp.allclose(l12, ref_l12, rtol=1e-4, atol=1e-4), (float(l12), float(ref_l12))

    print("KERNEL_OK")
</pallas_src>

<mosaic_0001>
module attributes {stable_mosaic.version = 11 : i64} {
  func.func @_mlp_base_kernel(%arg0: i32, %arg1: memref<16x8xf32, #tpu.memory_space<vmem>>, %arg2: memref<16x8xf32, #tpu.memory_space<vmem>>, %arg3: memref<8x8xf32, #tpu.memory_space<vmem>>, %arg4: memref<6x8xf32, #tpu.memory_space<vmem>>, %arg5: memref<6xf32, #tpu.memory_space<smem>>, %arg6: memref<6xf32, #tpu.memory_space<smem>>, %arg7: memref<1xf32, #tpu.memory_space<smem>>, %arg8: memref<1x1xf32, #tpu.memory_space<vmem>>, %arg9: memref<1x1xf32, #tpu.memory_space<vmem>>, %arg10: memref<8x8xf32, #tpu.memory_space<vmem>>) attributes {dimension_semantics = [#tpu.dimension_semantics<arbitrary>], iteration_bounds = array<i64: 1>, scalar_prefetch = 0 : i64, scratch_operands = 1 : i64, tpu.core_type = #tpu.core_type<tc>, window_params = [{transform_indices = @transform_0, window_bounds = array<i64: 16, 8>}, {transform_indices = @transform_1, window_bounds = array<i64: 16, 8>}, {pipeline_mode = #tpu.pipeline_mode<synchronous>, transform_indices = @transform_2, window_bounds = array<i64: 8, 8>}, {pipeline_mode = #tpu.pipeline_mode<synchronous>, transform_indices = @transform_3, window_bounds = array<i64: 6, 8>}, {transform_indices = @transform_4, window_bounds = array<i64: 6>}, {transform_indices = @transform_5, window_bounds = array<i64: 6>}, {transform_indices = @transform_6, window_bounds = array<i64: 1>}, {pipeline_mode = #tpu.pipeline_mode<synchronous>, transform_indices = @transform_7, window_bounds = array<i64: 1, 1>}, {pipeline_mode = #tpu.pipeline_mode<synchronous>, transform_indices = @transform_8, window_bounds = array<i64: 1, 1>}]} {
    %c0_i32 = arith.constant 0 : i32
    %0 = arith.cmpi eq, %arg0, %c0_i32 : i32
    %1 = arith.extui %0 : i1 to i32
    %c0_i32_0 = arith.constant 0 : i32
    %2 = arith.cmpi ne, %1, %c0_i32_0 : i32
    scf.if %2 {
      %cst_38 = arith.constant 0.000000e+00 : f32
      %102 = vector.broadcast %cst_38 : f32 to vector<1x1xf32>
      %c0_39 = arith.constant 0 : index
      %c0_40 = arith.constant 0 : index
      %103 = vector.load %arg8[%c0_39, %c0_40] : memref<1x1xf32, #tpu.memory_space<vmem>>, vector<1x1xf32>
      tpu.vector_store %arg8[%c0_39, %c0_40], %102 {strides = array<i32>} : memref<1x1xf32, #tpu.memory_space<vmem>>, vector<1x1xf32>,
      %c0_41 = arith.constant 0 : index
      %c0_42 = arith.constant 0 : index
      %104 = vector.load %arg3[%c0_41, %c0_42] : memref<8x8xf32, #tpu.memory_space<vmem>>, vector<8x8xf32>
      %105 = math.absf %104 : vector<8x8xf32>
      %106 = vector.shape_cast %105 : vector<8x8xf32> to vector<1x8x8xf32>
      %cst_43 = arith.constant dense<0.000000e+00> : vector<1xf32>
      %107 = vector.multi_reduction <add>, %106, %cst_43 [1, 2] : vector<1x8x8xf32> to vector<1xf32>
      %108 = vector.shape_cast %107 : vector<1xf32> to vector<1x1x1xf32>
      %109 = vector.extract %108[0, 0, 0] : f32 from vector<1x1x1xf32>
      %110 = vector.broadcast %109 : f32 to vector<1x1xf32>
      %c0_44 = arith.constant 0 : index
      %c0_45 = arith.constant 0 : index
      %111 = vector.load %arg9[%c0_44, %c0_45] : memref<1x1xf32, #tpu.memory_space<vmem>>, vector<1x1xf32>
      tpu.vector_store %arg9[%c0_44, %c0_45], %110 {strides = array<i32>} : memref<1x1xf32, #tpu.memory_space<vmem>>, vector<1x1xf32>,
      %c0_46 = arith.constant 0 : index
      %c0_47 = arith.constant 0 : index
      %112 = vector.load %arg3[%c0_46, %c0_47] : memref<8x8xf32, #tpu.memory_space<vmem>>, vector<8x8xf32>
      %cst_48 = arith.constant 0.000000e+00 : f32
      %113 = vector.broadcast %cst_48 : f32 to vector<8x8xf32>
      %114 = arith.maximumf %112, %113 : vector<8x8xf32>
      %c0_49 = arith.constant 0 : index
      %c0_50 = arith.constant 0 : index
      %115 = vector.load %arg10[%c0_49, %c0_50] : memref<8x8xf32, #tpu.memory_space<vmem>>, vector<8x8xf32>
      tpu.vector_store %arg10[%c0_49, %c0_50], %114 {strides = array<i32>} : memref<8x8xf32, #tpu.memory_space<vmem>>, vector<8x8xf32>,
    } else {
    }
    %c0 = arith.constant 0 : index
    %c0_1 = arith.constant 0 : index
    %3 = vector.load %arg1[%c0, %c0_1] : memref<16x8xf32, #tpu.memory_space<vmem>>, vector<16x8xf32>
    %c0_2 = arith.constant 0 : index
    %c0_3 = arith.constant 0 : index
    %4 = vector.load %arg10[%c0_2, %c0_3] : memref<8x8xf32, #tpu.memory_space<vmem>>, vector<8x8xf32>
    %c0_4 = arith.constant 0 : index
    %c0_5 = arith.constant 0 : index
    %5 = vector.load %arg4[%c0_4, %c0_5] : memref<6x8xf32, #tpu.memory_space<vmem>>, vector<1x8xf32>
    %6 = vector.broadcast %5 : vector<1x8xf32> to vector<16x8xf32>
    %7 = arith.mulf %3, %6 : vector<16x8xf32>
    %c1 = arith.constant 1 : index
    %c0_6 = arith.constant 0 : index
    %8 = vector.load %arg4[%c1, %c0_6] : memref<6x8xf32, #tpu.memory_space<vmem>>, vector<1x8xf32>
    %9 = vector.broadcast %8 : vector<1x8xf32> to vector<16x8xf32>
    %10 = arith.mulf %3, %9 : vector<16x8xf32>
    %c2 = arith.constant 2 : index
    %c0_7 = arith.constant 0 : index
    %11 = vector.load %arg4[%c2, %c0_7] : memref<6x8xf32, #tpu.memory_space<vmem>>, vector<1x8xf32>
    %12 = vector.broadcast %11 : vector<1x8xf32> to vector<16x8xf32>
    %13 = arith.mulf %3, %12 : vector<16x8xf32>
    %c3 = arith.constant 3 : index
    %c0_8 = arith.constant 0 : index
    %14 = vector.load %arg4[%c3, %c0_8] : memref<6x8xf32, #tpu.memory_space<vmem>>, vector<1x8xf32>
    %15 = vector.broadcast %14 : vector<1x8xf32> to vector<16x8xf32>
    %16 = arith.mulf %3, %15 : vector<16x8xf32>
    %c4 = arith.constant 4 : index
    %c0_9 = arith.constant 0 : index
    %17 = vector.load %arg4[%c4, %c0_9] : memref<6x8xf32, #tpu.memory_space<vmem>>, vector<1x8xf32>
    %18 = vector.broadcast %17 : vector<1x8xf32> to vector<16x8xf32>
    %19 = arith.mulf %3, %18 : vector<16x8xf32>
    %c5 = arith.constant 5 : index
    %c0_10 = arith.constant 0 : index
    %20 = vector.load %arg4[%c5, %c0_10] : memref<6x8xf32, #tpu.memory_space<vmem>>, vector<1x8xf32>
    %21 = vector.broadcast %20 : vector<1x8xf32> to vector<16x8xf32>
    %22 = arith.mulf %3, %21 : vector<16x8xf32>
    %23 = tpu.concatenate %7, %10, %13, %16, %19, %22 in 0 : vector<16x8xf32>, vector<16x8xf32>, vector<16x8xf32>, vector<16x8xf32>, vector<16x8xf32>, vector<16x8xf32> -> vector<96x8xf32>
    %cst = arith.constant dense<0.000000e+00> : vector<96x8xf32>
    %24 = tpu.matmul %23, %4, %cst {dimension_numbers = #tpu.dot_dimension_numbers<[1], [0], [0], [1], [0, 0, 1, 1], [], []>} : vector<96x8xf32>, vector<8x8xf32>, vector<96x8xf32> -> vector<96x8xf32>
    %cst_11 = arith.constant 0.000000e+00 : f32
    %25 = vector.broadcast %cst_11 : f32 to vector<16x8xf32>
    %c0_12 = arith.constant 0 : index
    %26 = memref.load %arg7[%c0_12] : memref<1xf32, #tpu.memory_space<smem>>
    %27 = vector.broadcast %26 : f32 to vector<16x8xf32>
    %28 = arith.addf %25, %27 : vector<16x8xf32>
    %29 = vector.extract_strided_slice %24 {offsets = [0, 0], sizes = [16, 8], strides = [1, 1]} : vector<96x8xf32> to vector<16x8xf32>
    %c0_13 = arith.constant 0 : index
    %30 = memref.load %arg5[%c0_13] : memref<6xf32, #tpu.memory_space<smem>>
    %31 = vector.broadcast %30 : f32 to vector<16x8xf32>
    %32 = arith.addf %29, %31 : vector<16x8xf32>
    %cst_14 = arith.constant 0.000000e+00 : f32
    %33 = vector.broadcast %cst_14 : f32 to vector<16x8xf32>
    %34 = arith.maximumf %32, %33 : vector<16x8xf32>
    %c0_15 = arith.constant 0 : index
    %35 = memref.load %arg6[%c0_15] : memref<6xf32, #tpu.memory_space<smem>>
    %36 = vector.broadcast %35 : f32 to vector<16x8xf32>
    %37 = arith.mulf %34, %36 : vector<16x8xf32>
    %38 = arith.addf %28, %37 : vector<16x8xf32>
    %39 = vector.extract_strided_slice %24 {offsets = [16, 0], sizes = [16, 8], strides = [1, 1]} : vector<96x8xf32> to vector<16x8xf32>
    %c1_16 = arith.constant 1 : index
    %40 = memref.load %arg5[%c1_16] : memref<6xf32, #tpu.memory_space<smem>>
    %41 = vector.broadcast %40 : f32 to vector<16x8xf32>
    %42 = arith.addf %39, %41 : vector<16x8xf32>
    %cst_17 = arith.constant 0.000000e+00 : f32
    %43 = vector.broadcast %cst_17 : f32 to vector<16x8xf32>
    %44 = arith.maximumf %42, %43 : vector<16x8xf32>
    %c1_18 = arith.constant 1 : index
    %45 = memref.load %arg6[%c1_18] : memref<6xf32, #tpu.memory_space<smem>>
    %46 = vector.broadcast %45 : f32 to vector<16x8xf32>
    %47 = arith.mulf %44, %46 : vector<16x8xf32>
    %48 = arith.addf %38, %47 : vector<16x8xf32>
    %49 = vector.extract_strided_slice %24 {offsets = [32, 0], sizes = [16, 8], strides = [1, 1]} : vector<96x8xf32> to vector<16x8xf32>
    %c2_19 = arith.constant 2 : index
    %50 = memref.load %arg5[%c2_19] : memref<6xf32, #tpu.memory_space<smem>>
    %51 = vector.broadcast %50 : f32 to vector<16x8xf32>
    %52 = arith.addf %49, %51 : vector<16x8xf32>
    %cst_20 = arith.constant 0.000000e+00 : f32
    %53 = vector.broadcast %cst_20 : f32 to vector<16x8xf32>
    %54 = arith.maximumf %52, %53 : vector<16x8xf32>
    %c2_21 = arith.constant 2 : index
    %55 = memref.load %arg6[%c2_21] : memref<6xf32, #tpu.memory_space<smem>>
    %56 = vector.broadcast %55 : f32 to vector<16x8xf32>
    %57 = arith.mulf %54, %56 : vector<16x8xf32>
    %58 = arith.addf %48, %57 : vector<16x8xf32>
    %59 = vector.extract_strided_slice %24 {offsets = [48, 0], sizes = [16, 8], strides = [1, 1]} : vector<96x8xf32> to vector<16x8xf32>
    %c3_22 = arith.constant 3 : index
    %60 = memref.load %arg5[%c3_22] : memref<6xf32, #tpu.memory_space<smem>>
    %61 = vector.broadcast %60 : f32 to vector<16x8xf32>
    %62 = arith.addf %59, %61 : vector<16x8xf32>
    %cst_23 = arith.constant 0.000000e+00 : f32
    %63 = vector.broadcast %cst_23 : f32 to vector<16x8xf32>
    %64 = arith.maximumf %62, %63 : vector<16x8xf32>
    %c3_24 = arith.constant 3 : index
    %65 = memref.load %arg6[%c3_24] : memref<6xf32, #tpu.memory_space<smem>>
    %66 = vector.broadcast %65 : f32 to vector<16x8xf32>
    %67 = arith.mulf %64, %66 : vector<16x8xf32>
    %68 = arith.addf %58, %67 : vector<16x8xf32>
    %69 = vector.extract_strided_slice %24 {offsets = [64, 0], sizes = [16, 8], strides = [1, 1]} : vector<96x8xf32> to vector<16x8xf32>
    %c4_25 = arith.constant 4 : index
    %70 = memref.load %arg5[%c4_25] : memref<6xf32, #tpu.memory_space<smem>>
    %71 = vector.broadcast %70 : f32 to vector<16x8xf32>
    %72 = arith.addf %69, %71 : vector<16x8xf32>
    %cst_26 = arith.constant 0.000000e+00 : f32
    %73 = vector.broadcast %cst_26 : f32 to vector<16x8xf32>
    %74 = arith.maximumf %72, %73 : vector<16x8xf32>
    %c4_27 = arith.constant 4 : index
    %75 = memref.load %arg6[%c4_27] : memref<6xf32, #tpu.memory_space<smem>>
    %76 = vector.broadcast %75 : f32 to vector<16x8xf32>
    %77 = arith.mulf %74, %76 : vector<16x8xf32>
    %78 = arith.addf %68, %77 : vector<16x8xf32>
    %79 = vector.extract_strided_slice %24 {offsets = [80, 0], sizes = [16, 8], strides = [1, 1]} : vector<96x8xf32> to vector<16x8xf32>
    %c5_28 = arith.constant 5 : index
    %80 = memref.load %arg5[%c5_28] : memref<6xf32, #tpu.memory_space<smem>>
    %81 = vector.broadcast %80 : f32 to vector<16x8xf32>
    %82 = arith.addf %79, %81 : vector<16x8xf32>
    %cst_29 = arith.constant 0.000000e+00 : f32
    %83 = vector.broadcast %cst_29 : f32 to vector<16x8xf32>
    %84 = arith.maximumf %82, %83 : vector<16x8xf32>
    %c5_30 = arith.constant 5 : index
    %85 = memref.load %arg6[%c5_30] : memref<6xf32, #tpu.memory_space<smem>>
    %86 = vector.broadcast %85 : f32 to vector<16x8xf32>
    %87 = arith.mulf %84, %86 : vector<16x8xf32>
    %88 = arith.addf %78, %87 : vector<16x8xf32>
    %c0_31 = arith.constant 0 : index
    %c0_32 = arith.constant 0 : index
    %89 = vector.load %arg2[%c0_31, %c0_32] : memref<16x8xf32, #tpu.memory_space<vmem>>, vector<16x8xf32>
    %90 = arith.subf %88, %89 : vector<16x8xf32>
    %c16_i32 = arith.constant 16 : i32
    %91 = arith.muli %arg0, %c16_i32 : i32
    %c16_i32_33 = arith.constant 16 : i32
    %92 = arith.addi %91, %c16_i32_33 : i32
    %c15_i32 = arith.constant 15 : i32
    %93 = arith.cmpi sle, %92, %c15_i32 : i32
    %94 = arith.extui %93 : i1 to i32
    %c0_i32_34 = arith.constant 0 : i32
    %95 = arith.cmpi ne, %94, %c0_i32_34 : i32
    scf.if %95 {
      %c0_38 = arith.constant 0 : index
      %c0_39 = arith.constant 0 : index
      %102 = vector.load %arg8[%c0_38, %c0_39] : memref<1x1xf32, #tpu.memory_space<vmem>>, vector<1x1xf32>
      %103 = arith.mulf %90, %90 : vector<16x8xf32>
      %104 = vector.shape_cast %103 : vector<16x8xf32> to vector<1x16x8xf32>
      %cst_40 = arith.constant dense<0.000000e+00> : vector<1xf32>
      %105 = vector.multi_reduction <add>, %104, %cst_40 [1, 2] : vector<1x16x8xf32> to vector<1xf32>
      %106 = vector.shape_cast %105 : vector<1xf32> to vector<1x1x1xf32>
      %107 = vector.extract %106[0, 0, 0] : f32 from vector<1x1x1xf32>
      %108 = vector.broadcast %107 : f32 to vector<1x1xf32>
      %109 = arith.addf %102, %108 : vector<1x1xf32>
      %c0_41 = arith.constant 0 : index
      %c0_42 = arith.constant 0 : index
      %110 = vector.load %arg8[%c0_41, %c0_42] : memref<1x1xf32, #tpu.memory_space<vmem>>, vector<1x1xf32>
      tpu.vector_store %arg8[%c0_41, %c0_42], %109 {strides = array<i32>} : memref<1x1xf32, #tpu.memory_space<vmem>>, vector<1x1xf32>,
    } else {
    }
    %true = arith.constant true
    %96 = arith.xori %93, %true : i1
    %97 = arith.extui %96 : i1 to i32
    %c0_i32_35 = arith.constant 0 : i32
    %98 = arith.cmpi ne, %97, %c0_i32_35 : i32
    scf.if %98 {
      %102 = tpu.iota {dimensions = array<i32: 0>} : vector<16x1xi32>
      %103 = vector.broadcast %91 : i32 to vector<16x1xi32>
      %104 = arith.addi %102, %103 : vector<16x1xi32>
      %c15_i32_38 = arith.constant 15 : i32
      %105 = vector.broadcast %c15_i32_38 : i32 to vector<16x1xi32>
      %106 = arith.cmpi slt, %104, %105 : vector<16x1xi32>
      %107 = arith.extui %106 : vector<16x1xi1> to vector<16x1xi32>
      %108 = arith.sitofp %107 : vector<16x1xi32> to vector<16x1xf32>
      %c0_39 = arith.constant 0 : index
      %c0_40 = arith.constant 0 : index
      %109 = vector.load %arg8[%c0_39, %c0_40] : memref<1x1xf32, #tpu.memory_space<vmem>>, vector<1x1xf32>
      %110 = arith.mulf %90, %90 : vector<16x8xf32>
      %111 = vector.broadcast %108 : vector<16x1xf32> to vector<16x8xf32>
      %112 = arith.mulf %110, %111 : vector<16x8xf32>
      %113 = vector.shape_cast %112 : vector<16x8xf32> to vector<1x16x8xf32>
      %cst_41 = arith.constant dense<0.000000e+00> : vector<1xf32>
      %114 = vector.multi_reduction <add>, %113, %cst_41 [1, 2] : vector<1x16x8xf32> to vector<1xf32>
      %115 = vector.shape_cast %114 : vector<1xf32> to vector<1x1x1xf32>
      %116 = vector.extract %115[0, 0, 0] : f32 from vector<1x1x1xf32>
      %117 = vector.broadcast %116 : f32 to vector<1x1xf32>
      %118 = arith.addf %109, %117 : vector<1x1xf32>
      %c0_42 = arith.constant 0 : index
      %c0_43 = arith.constant 0 : index
      %119 = vector.load %arg8[%c0_42, %c0_43] : memref<1x1xf32, #tpu.memory_space<vmem>>, vector<1x1xf32>
      tpu.vector_store %arg8[%c0_42, %c0_43], %118 {strides = array<i32>} : memref<1x1xf32, #tpu.memory_space<vmem>>, vector<1x1xf32>,
    } else {
    }
    %c0_i32_36 = arith.constant 0 : i32
    %99 = arith.cmpi eq, %arg0, %c0_i32_36 : i32
    %100 = arith.extui %99 : i1 to i32
    %c0_i32_37 = arith.constant 0 : i32
    %101 = arith.cmpi ne, %100, %c0_i32_37 : i32
    scf.if %101 {
      %c0_38 = arith.constant 0 : index
      %c0_39 = arith.constant 0 : index
      %102 = vector.load %arg8[%c0_38, %c0_39] : memref<1x1xf32, #tpu.memory_space<vmem>>, vector<1x1xf32>
      %cst_40 = arith.constant 0.00833333377 : f32
      %103 = vector.broadcast %cst_40 : f32 to vector<1x1xf32>
      %104 = arith.mulf %102, %103 : vector<1x1xf32>
      %c0_41 = arith.constant 0 : index
      %c0_42 = arith.constant 0 : index
      %105 = vector.load %arg8[%c0_41, %c0_42] : memref<1x1xf32, #tpu.memory_space<vmem>>, vector<1x1xf32>
      tpu.vector_store %arg8[%c0_41, %c0_42], %104 {strides = array<i32>} : memref<1x1xf32, #tpu.memory_space<vmem>>, vector<1x1xf32>,
    } else {
    }
    return
  }
  func.func @transform_0(%arg0: i32) -> (i32, i32) {
    %c0_i32 = arith.constant 0 : i32
    %c0_i32_0 = arith.constant 0 : i32
    return %arg0, %c0_i32 : i32, i32
  }
  func.func @transform_1(%arg0: i32) -> (i32, i32) {
    %c0_i32 = arith.constant 0 : i32
    %c0_i32_0 = arith.constant 0 : i32
    return %arg0, %c0_i32 : i32, i32
  }
  func.func @transform_2(%arg0: i32) -> (i32, i32) {
    %c0_i32 = arith.constant 0 : i32
    %c0_i32_0 = arith.constant 0 : i32
    %c0_i32_1 = arith.constant 0 : i32
    return %c0_i32, %c0_i32_0 : i32, i32
  }
  func.func @transform_3(%arg0: i32) -> (i32, i32) {
    %c0_i32 = arith.constant 0 : i32
    %c0_i32_0 = arith.constant 0 : i32
    %c0_i32_1 = arith.constant 0 : i32
    return %c0_i32, %c0_i32_0 : i32, i32
  }
  func.func @transform_4(%arg0: i32) -> i32 {
    %c0_i32 = arith.constant 0 : i32
    %c0_i32_0 = arith.constant 0 : i32
    return %c0_i32 : i32
  }
  func.func @transform_5(%arg0: i32) -> i32 {
    %c0_i32 = arith.constant 0 : i32
    %c0_i32_0 = arith.constant 0 : i32
    return %c0_i32 : i32
  }
  func.func @transform_6(%arg0: i32) -> i32 {
    %c0_i32 = arith.constant 0 : i32
    %c0_i32_0 = arith.constant 0 : i32
    return %c0_i32 : i32
  }
  func.func @transform_7(%arg0: i32) -> (i32, i32) {
    %c0_i32 = arith.constant 0 : i32
    %c0_i32_0 = arith.constant 0 : i32
    %c0_i32_1 = arith.constant 0 : i32
    return %c0_i32, %c0_i32_0 : i32, i32
  }
  func.func @transform_8(%arg0: i32) -> (i32, i32) {
    %c0_i32 = arith.constant 0 : i32
    %c0_i32_0 = arith.constant 0 : i32
    %c0_i32_1 = arith.constant 0 : i32
    return %c0_i32, %c0_i32_0 : i32, i32
  }
}

</mosaic_0001>

<llo_original>
// kernel: tpu_custom_call.1
$region0: #{tpu_custom_call.1}
  #allocation0 [shape = 'u32[]', space=smem, size = 0x4, offset = 0x4, fixed_abs, tag = 'smem constant byte address 0x4 - core index']
  #allocation1 [shape = 'u32[144,128]{1,0:T(1,128)}', space=vmem, size = 0x12000, scoped, tag = 'internal scratch']
  #allocation2 [shape = 'f32[8,8]{1,0:T(8,128)}', space=vmem, size = 0x1000, scoped, tag = 'scratch operand']
  #allocation3 [shape = 'f32[1]{0:T(128)S(6)}', space=smem, size = 0x200, scoped, tag = 'scoped memory for tpu_custom_call.1']
  %s0 = inlined_call_operand.vmem [shape: f32[16,8], index: 0, kind: input, shape index: {}]
  %s1 = inlined_call_operand.vmem [shape: f32[16,8], index: 1, kind: input, shape index: {}]
  %s2 = inlined_call_operand.vmem [shape: f32[8,8], index: 2, kind: input, shape index: {}]
  %s3 = inlined_call_operand.vmem [shape: f32[6,8], index: 3, kind: input, shape index: {}]
  %s4 = inlined_call_operand.vmem [shape: f32[6], index: 4, kind: input, shape index: {}]
  %s5 = inlined_call_operand.vmem [shape: f32[6], index: 5, kind: input, shape index: {}]
  %s6 = inlined_call_operand.<no memory space> [shape: f32[1], index: 6, kind: input, shape index: {}]
  %s7 = inlined_call_operand.hbm [shape: f32[1,1], index: 7, kind: output, shape index: {0}]
  %s8 = inlined_call_operand.hbm [shape: f32[1,1], index: 8, kind: output, shape index: {1}]
  %9 = xla_tuple %s7, %s8
  %s10 = sld [smem:[#allocation0]]
  $region70: #{tpu_custom_call.1} parent=0
    _
  %s12 = ssub.s32 1, %s10
  %s13 = scalar_select 0, %s12, %s10
  %14 = sst [smem:[#allocation3]] %s6
  $region1: #{tpu_custom_call.1} parent=0
    #allocation4 [shape = 'u8[512]{0}', space=smem, size = 0x200, scoped, tag = 'input window, operand 4, single buffered']
    #allocation5 [shape = 's32[1]{0}', space=sflag, size = 0x4, scoped, tag = 'scoped memory for tpu_custom_call.1']
    #allocation6 [shape = 's32[1]{0}', space=sflag, size = 0x4, scoped, tag = 'scoped memory for tpu_custom_call.1']
    #allocation7 [shape = 'u8[512]{0}', space=smem, size = 0x200, scoped, tag = 'input window, operand 5, single buffered']
    #allocation8 [shape = 's32[1]{0}', space=sflag, size = 0x4, scoped, tag = 'scoped memory for tpu_custom_call.1']
    #allocation9 [shape = 'u8[512]{0}', space=vmem, size = 0x400, scoped, tag = 'output window, operand 0, single buffered']
    #allocation10 [shape = 'u8[512]{0}', space=vmem, size = 0x400, scoped, tag = 'output window, operand 1, single buffered']
    #allocation11 [shape = 's32[1]{0}', space=sflag, size = 0x4, scoped, tag = 'scoped memory for tpu_custom_call.1']
    %15 = vsyncpa [#allocation6], 0
    %16 = vsyncpa [#allocation8], 0
    %17 = vsyncpa [#allocation5], 0
    %18 = vsyncpa [#allocation11], 0
    // Predicated region
    $region2: #{tpu_custom_call.1} parent=1 // pred_check
      _
    $region3: #{tpu_custom_call.1} parent=1 // pred_check_branch
      %20 = sbr.rel (0) target = $region5
    $region4: #{tpu_custom_call.1} parent=1 // pred_region
      _
    $region5: #{tpu_custom_call.1} parent=1 // pred_fallthru
      _
    // Predicated region
    $region6: #{tpu_custom_call.1} parent=1 // pred_check
      _
    $region7: #{tpu_custom_call.1} parent=1 // pred_check_branch
      %22 = sbr.rel (0) target = $region9
    $region8: #{tpu_custom_call.1} parent=1 // pred_region
      _
    $region9: #{tpu_custom_call.1} parent=1 // pred_fallthru
      _
    // Predicated region
    $region10: #{tpu_custom_call.1} parent=1 // pred_check
      _
    $region11: #{tpu_custom_call.1} parent=1 // pred_check_branch
      %24 = sbr.rel (0) target = $region13
    $region12: #{tpu_custom_call.1} parent=1 // pred_region
      _
    $region13: #{tpu_custom_call.1} parent=1 // pred_fallthru
      _
    // Predicated region
    $region14: #{tpu_custom_call.1} parent=1 // pred_check
      _
    $region15: #{tpu_custom_call.1} parent=1 // pred_check_branch
      %26 = sbr.rel (0) target = $region17
    $region16: #{tpu_custom_call.1} parent=1 // pred_region
      _
    $region17: #{tpu_custom_call.1} parent=1 // pred_fallthru
      _
    // Predicated region
    $region18: #{tpu_custom_call.1} parent=1 // pred_check
      _
    $region19: #{tpu_custom_call.1} parent=1 // pred_check_branch
      %28 = sbr.rel (0) target = $region21
    $region20: #{tpu_custom_call.1} parent=1 // pred_region
      %s30 = ssub.s32 16, 16
      %31 = vsyncadd [#allocation6], %s30
      %s33 = sshll.u32 %s4, 4
      %s34 = int_to_ptr.vmem [resolvable:$true] %s33
      %36 = dma.vmem_to_smem %s34, 16, [#allocation4], [#allocation6]
    $region21: #{tpu_custom_call.1} parent=1 // pred_fallthru
      _
    // Predicated region
    $region22: #{tpu_custom_call.1} parent=1 // pred_check
      _
    $region23: #{tpu_custom_call.1} parent=1 // pred_check_branch
      %38 = sbr.rel (0) target = $region25
    $region24: #{tpu_custom_call.1} parent=1 // pred_region
      %s40 = ssub.s32 16, 16
      %41 = vsyncadd [#allocation8], %s40
      %s43 = sshll.u32 %s5, 4
      %s44 = int_to_ptr.vmem [resolvable:$true] %s43
      %46 = dma.vmem_to_smem %s44, 16, [#allocation7], [#allocation8]
    $region25: #{tpu_custom_call.1} parent=1 // pred_fallthru
      _
    // Predicated region
    $region26: #{tpu_custom_call.1} parent=1 // pred_check
      _
    $region27: #{tpu_custom_call.1} parent=1 // pred_check_branch
      %48 = sbr.rel (0) target = $region29
    $region28: #{tpu_custom_call.1} parent=1 // pred_region
      _
    $region29: #{tpu_custom_call.1} parent=1 // pred_fallthru
      _
    // Predicated region
    $region30: #{tpu_custom_call.1} parent=1 // pred_check
      _
    $region31: #{tpu_custom_call.1} parent=1 // pred_check_branch
      %50 = sbr.rel (0) target = $region33
    $region32: #{tpu_custom_call.1} parent=1 // pred_region
      %51 = dma.done [#allocation6], 16
    $region33: #{tpu_custom_call.1} parent=1 // pred_fallthru
      _
    // Predicated region
    $region34: #{tpu_custom_call.1} parent=1 // pred_check
      _
    $region35: #{tpu_custom_call.1} parent=1 // pred_check_branch
      %53 = sbr.rel (0) target = $region37
    $region36: #{tpu_custom_call.1} parent=1 // pred_region
      %54 = dma.done [#allocation8], 16
    $region37: #{tpu_custom_call.1} parent=1 // pred_fallthru
      _
    %55 = sfence
    %p56 = scmp.eq.s32.totalorder 0, 0
    // Predicated region
    $region38: #{tpu_custom_call.1} parent=1 // pred_check
      %p57 = pneg %p56
    $region39: #{tpu_custom_call.1} parent=1 // pred_check_branch
      %59 = sbr.rel (%p57) target = $region41
    $region40: #{tpu_custom_call.1} parent=1 // pred_region
      %vm60 = vcmask 0
      %61 = vst.msk [vmem:[#allocation9] sm:$0x1] %vm60, 0.0
      %v62 = vld [vmem:[%s2] sm:$0xff]
      %v63 = vand.u32 2147483647, %v62
      %vm64 = vcmask 64512
      %v65 = vsel %vm64, %v63, 0.0
      %66 = vadd.xlane.f32.xlu0 %v65
      %v67 = vpop.xlane.xlu0 %66
      %v68 = vrot.slane %v67, 4
      %v69 = vadd.f32 %v67, %v68
      %v70 = vrot.slane %v69, 2
      %v71 = vadd.f32 %v69, %v70
      %v72 = vrot.slane %v71, 1
      %v73 = vadd.f32 %v71, %v72
      %s74 = vtos %v73
      %v75 = vstv %s74
      %76 = vst.msk [vmem:[#allocation10] sm:$0x1] %vm60, %v75
      %v77 = vld [vmem:[%s2] sm:$0xff]
      %v78 = vmax.f32 %v77, 0.0
      %79 = vst.msk [vmem:[#allocation2] sm:$0xff] %vm64, %v78
    $region41: #{tpu_custom_call.1} parent=1 // pred_fallthru
      _
    %v80 = vld [vmem:[%s0] sm:$0xff]
    %v81 = vld [vmem:[%s0 + $0x8] sm:$0xff]
    %v82 = vld [vmem:[#allocation2] sm:$0xff]
    %v83 = vld [vmem:[%s3] sm:$0x1]
    %v84 = vlaneseq
    %v85 = vshrl.u32 %v84, 7
    %v86 = vsub.s32 0, %v85
    %v87 = vrot.slane %v83, %v86
    %v88 = vmul.f32 %v80, %v87
    %v89 = vmul.f32 %v81, %v87
    %v90 = vld [vmem:[%s3 + $0x1] sm:$0x1]
    %v91 = vlaneseq
    %v92 = vshrl.u32 %v91, 7
    %v93 = vsub.s32 0, %v92
    %v94 = vrot.slane %v90, %v93
    %v95 = vmul.f32 %v80, %v94
    %v96 = vmul.f32 %v81, %v94
    %v97 = vld [vmem:[%s3 + $0x2] sm:$0x1]
    %v98 = vlaneseq
    %v99 = vshrl.u32 %v98, 7
    %v100 = vsub.s32 0, %v99
    %v101 = vrot.slane %v97, %v100
    %v102 = vmul.f32 %v80, %v101
    %v103 = vmul.f32 %v81, %v101
    %v104 = vld [vmem:[%s3 + $0x3] sm:$0x1]
    %v105 = vlaneseq
    %v106 = vshrl.u32 %v105, 7
    %v107 = vsub.s32 0, %v106
    %v108 = vrot.slane %v104, %v107
    %v109 = vmul.f32 %v80, %v108
    %v110 = vmul.f32 %v81, %v108
    %v111 = vld [vmem:[%s3 + $0x4] sm:$0x1]
    %v112 = vlaneseq
    %v113 = vshrl.u32 %v112, 7
    %v114 = vsub.s32 0, %v113
    %v115 = vrot.slane %v111, %v114
    %v116 = vmul.f32 %v80, %v115
    %v117 = vmul.f32 %v81, %v115
    %v118 = vld [vmem:[%s3 + $0x5] sm:$0x1]
    %v119 = vlaneseq
    %v120 = vshrl.u32 %v119, 7
    %v121 = vsub.s32 0, %v120
    %v122 = vrot.slane %v118, %v121
    %v123 = vmul.f32 %v80, %v122
    %v124 = vmul.f32 %v81, %v122
    %vm125 = vcmask 64512
    %v127 = vsel %vm125, %v88, 0
    %v130 = vsel %vm125, %v89, 0
    %v133 = vsel %vm125, %v95, 0
    %v136 = vsel %vm125, %v96, 0
    %v139 = vsel %vm125, %v102, 0
    %v142 = vsel %vm125, %v103, 0
    %v145 = vsel %vm125, %v109, 0
    %v148 = vsel %vm125, %v110, 0
    %v151 = vsel %vm125, %v116, 0
    %v154 = vsel %vm125, %v117, 0
    %v157 = vsel %vm125, %v123, 0
    %v160 = vsel %vm125, %v124, 0
    %162 = vmatprep.subr.mxu0 0.0
    %163 = vmatpush1.msra.mxu0 %v82
    %164 = vmatprep.subr.mxu0 0.0
    %165 = vmatpush1.msra.mxu0 0.0
    %166 = vmatprep.subr.mxu0 0.0
    %167 = vmatpush1.msra.mxu0 0.0
    %168 = vmatprep.subr.mxu0 0.0
    %169 = vmatpush1.msra.mxu0 0.0
    %170 = vmatprep.subr.mxu0 0.0
    %171 = vmatpush1.msra.mxu0 0.0
    %172 = vmatprep.subr.mxu0 0.0
    %173 = vmatpush1.msra.mxu0 0.0
    %174 = vmatprep.subr.mxu0 0.0
    %175 = vmatpush1.msra.mxu0 0.0
    %176 = vmatprep.subr.mxu0 0.0
    %177 = vmatpush1.msra.mxu0 0.0
    %178 = vmatprep.subr.mxu0 0.0
    %179 = vmatpush1.msra.mxu0 0.0
    %180 = vmatprep.subr.mxu0 0.0
    %181 = vmatpush1.msra.mxu0 0.0
    %182 = vmatprep.subr.mxu0 0.0
    %183 = vmatpush1.msra.mxu0 0.0
    %184 = vmatprep.subr.mxu0 0.0
    %185 = vmatpush1.msra.mxu0 0.0
    %186 = vmatprep.subr.mxu0 0.0
    %187 = vmatpush1.msra.mxu0 0.0
    %188 = vmatprep.subr.mxu0 0.0
    %189 = vmatpush1.msra.mxu0 0.0
    %190 = vmatprep.subr.mxu0 0.0
    %191 = vmatpush1.msra.mxu0 0.0
    %192 = vmatprep.subr.mxu0 0.0
    %193 = vmatpush1.msra.mxu0 0.0
    %194 = vmatprep.subr.mxu0 0.0
    %195 = vmatpush1.msra.mxu0 0.0
    %196 = vmatprep.subr.mxu0 0.0
    %197 = vmatpush1.msra.mxu0 0.0
    %198 = vmatprep.subr.mxu0 0.0
    %199 = vmatpush1.msra.mxu0 0.0
    %200 = vmatprep.subr.mxu0 0.0
    %201 = vmatpush1.msra.mxu0 0.0
    %202 = vmatprep.subr.mxu0 0.0
    %203 = vmatpush1.msra.mxu0 0.0
    %204 = vmatprep.subr.mxu0 0.0
    %205 = vmatpush1.msra.mxu0 0.0
    %206 = vmatprep.subr.mxu0 0.0
    %207 = vmatpush1.msra.mxu0 0.0
    %208 = vmatprep.subr.mxu0 0.0
    %209 = vmatpush1.msra.mxu0 0.0
    %210 = vmatprep.subr.mxu0 0.0
    %211 = vmatpush1.msra.mxu0 0.0
    %212 = vmatprep.subr.mxu0 0.0
    %213 = vmatpush1.msra.mxu0 0.0
    %214 = vmatprep.subr.mxu0 0.0
    %215 = vmatpush1.msra.mxu0 0.0
    %216 = vmatprep.subr.mxu0 0.0
    %217 = vmatpush1.msra.mxu0 0.0
    %218 = vmatprep.subr.mxu0 0.0
    %219 = vmatpush1.msra.mxu0 0.0
    %220 = vmatprep.subr.mxu0 0.0
    %221 = vmatpush1.msra.mxu0 0.0
    %222 = vmatprep.subr.mxu0 0.0
    %223 = vmatpush1.msra.mxu0 0.0
    %224 = vmatprep.subr.mxu0 0.0
    %225 = vmatpush1.msra.mxu0 0.0
    %226 = vmatprep.mubr.f32.mxu0 0.0
    %227 = vmatmul.mubr.f32.gmra.mrb[0].mxu0 %v127
    %v228 = vpop.f32.mrb[0].mxu0
    %v229 = vadd.f32 0.0, %v228
    %v230 = vpop.f32.mrb[0].mxu0
    %231 = vmatprep.mubr.f32.mxu0 0.0
    %232 = vmatmul.mubr.f32.gmra.mrb[0].mxu0 %v130
    %v233 = vpop.f32.mrb[0].mxu0
    %v234 = vadd.f32 0.0, %v233
    %v235 = vpop.f32.mrb[0].mxu0
    %236 = vmatprep.mubr.f32.mxu0 0.0
    %237 = vmatmul.mubr.f32.gmra.mrb[0].mxu0 %v133
    %v238 = vpop.f32.mrb[0].mxu0
    %v239 = vadd.f32 0.0, %v238
    %v240 = vpop.f32.mrb[0].mxu0
    %241 = vmatprep.mubr.f32.mxu0 0.0
    %242 = vmatmul.mubr.f32.gmra.mrb[0].mxu0 %v136
    %v243 = vpop.f32.mrb[0].mxu0
    %v244 = vadd.f32 0.0, %v243
    %v245 = vpop.f32.mrb[0].mxu0
    %246 = vmatprep.mubr.f32.mxu0 0.0
    %247 = vmatmul.mubr.f32.gmra.mrb[0].mxu0 %v139
    %v248 = vpop.f32.mrb[0].mxu0
    %v249 = vadd.f32 0.0, %v248
    %v250 = vpop.f32.mrb[0].mxu0
    %251 = vmatprep.mubr.f32.mxu0 0.0
    %252 = vmatmul.mubr.f32.gmra.mrb[0].mxu0 %v142
    %v253 = vpop.f32.mrb[0].mxu0
    %v254 = vadd.f32 0.0, %v253
    %v255 = vpop.f32.mrb[0].mxu0
    %256 = vmatprep.mubr.f32.mxu0 0.0
    %257 = vmatmul.mubr.f32.gmra.mrb[0].mxu0 %v145
    %v258 = vpop.f32.mrb[0].mxu0
    %v259 = vadd.f32 0.0, %v258
    %v260 = vpop.f32.mrb[0].mxu0
    %261 = vmatprep.mubr.f32.mxu0 0.0
    %262 = vmatmul.mubr.f32.gmra.mrb[0].mxu0 %v148
    %v263 = vpop.f32.mrb[0].mxu0
    %v264 = vadd.f32 0.0, %v263
    %v265 = vpop.f32.mrb[0].mxu0
    %266 = vmatprep.mubr.f32.mxu0 0.0
    %267 = vmatmul.mubr.f32.gmra.mrb[0].mxu0 %v151
    %v268 = vpop.f32.mrb[0].mxu0
    %v269 = vadd.f32 0.0, %v268
    %v270 = vpop.f32.mrb[0].mxu0
    %271 = vmatprep.mubr.f32.mxu0 0.0
    %272 = vmatmul.mubr.f32.gmra.mrb[0].mxu0 %v154
    %v273 = vpop.f32.mrb[0].mxu0
    %v274 = vadd.f32 0.0, %v273
    %v275 = vpop.f32.mrb[0].mxu0
    %276 = vmatprep.mubr.f32.mxu0 0.0
    %277 = vmatmul.mubr.f32.gmra.mrb[0].mxu0 %v157
    %v278 = vpop.f32.mrb[0].mxu0
    %v279 = vadd.f32 0.0, %v278
    %v280 = vpop.f32.mrb[0].mxu0
    %281 = vmatprep.mubr.f32.mxu0 0.0
    %282 = vmatmul.mubr.f32.gmra.mrb[0].mxu0 %v160
    %v283 = vpop.f32.mrb[0].mxu0
    %v284 = vadd.f32 0.0, %v283
    %v285 = vpop.f32.mrb[0].mxu0
    %286 = vdwg.mxu0
    %s287 = sld [smem:[#allocation3]]
    %v288 = vstv %s287
    %v289 = vadd.f32 %v288, 0.0
    %s290 = sld [smem:[#allocation4]]
    %v291 = vstv %s290
    %v292 = vadd.f32 %v229, %v291
    %v293 = vadd.f32 %v234, %v291
    %v294 = vmax.f32 %v292, 0.0
    %v295 = vmax.f32 %v293, 0.0
    %s296 = sld [smem:[#allocation7]]
    %v297 = vstv %s296
    %v298 = vmul.f32 %v294, %v297
    %v299 = vmul.f32 %v295, %v297
    %v300 = vadd.f32 %v289, %v298
    %v301 = vadd.f32 %v289, %v299
    %s302 = sld [smem:[#allocation4 + $0x1]]
    %v303 = vstv %s302
    %v304 = vadd.f32 %v239, %v303
    %v305 = vadd.f32 %v244, %v303
    %v306 = vmax.f32 %v304, 0.0
    %v307 = vmax.f32 %v305, 0.0
    %s308 = sld [smem:[#allocation7 + $0x1]]
    %v309 = vstv %s308
    %v310 = vmul.f32 %v306, %v309
    %v311 = vmul.f32 %v307, %v309
    %v312 = vadd.f32 %v300, %v310
    %v313 = vadd.f32 %v301, %v311
    %s314 = sld [smem:[#allocation4 + $0x2]]
    %v315 = vstv %s314
    %v316 = vadd.f32 %v249, %v315
    %v317 = vadd.f32 %v254, %v315
    %v318 = vmax.f32 %v316, 0.0
    %v319 = vmax.f32 %v317, 0.0
    %s320 = sld [smem:[#allocation7 + $0x2]]
    %v321 = vstv %s320
    %v322 = vmul.f32 %v318, %v321
    %v323 = vmul.f32 %v319, %v321
    %v324 = vadd.f32 %v312, %v322
    %v325 = vadd.f32 %v313, %v323
    %s326 = sld [smem:[#allocation4 + $0x3]]
    %v327 = vstv %s326
    %v328 = vadd.f32 %v259, %v327
    %v329 = vadd.f32 %v264, %v327
    %v330 = vmax.f32 %v328, 0.0
    %v331 = vmax.f32 %v329, 0.0
    %s332 = sld [smem:[#allocation7 + $0x3]]
    %v333 = vstv %s332
    %v334 = vmul.f32 %v330, %v333
    %v335 = vmul.f32 %v331, %v333
    %v336 = vadd.f32 %v324, %v334
    %v337 = vadd.f32 %v325, %v335
    %s338 = sld [smem:[#allocation4 + $0x4]]
    %v339 = vstv %s338
    %v340 = vadd.f32 %v269, %v339
    %v341 = vadd.f32 %v274, %v339
    %v342 = vmax.f32 %v340, 0.0
    %v343 = vmax.f32 %v341, 0.0
    %s344 = sld [smem:[#allocation7 + $0x4]]
    %v345 = vstv %s344
    %v346 = vmul.f32 %v342, %v345
    %v347 = vmul.f32 %v343, %v345
    %v348 = vadd.f32 %v336, %v346
    %v349 = vadd.f32 %v337, %v347
    %s350 = sld [smem:[#allocation4 + $0x5]]
    %v351 = vstv %s350
    %v352 = vadd.f32 %v279, %v351
    %v353 = vadd.f32 %v284, %v351
    %v354 = vmax.f32 %v352, 0.0
    %v355 = vmax.f32 %v353, 0.0
    %s356 = sld [smem:[#allocation7 + $0x5]]
    %v357 = vstv %s356
    %v358 = vmul.f32 %v354, %v357
    %v359 = vmul.f32 %v355, %v357
    %v360 = vadd.f32 %v348, %v358
    %v361 = vadd.f32 %v349, %v359
    %v362 = vld [vmem:[%s1] sm:$0xff]
    %v363 = vld [vmem:[%s1 + $0x8] sm:$0xff]
    %v364 = vsub.f32 %v360, %v362
    %v365 = vsub.f32 %v361, %v363
    %s366 = smul.u32 0, 16
    %s367 = sadd.s32 %s366, 16
    %p368 = scmp.le.s32.totalorder %s367, 15
    // Predicated region
    $region42: #{tpu_custom_call.1} parent=1 // pred_check
      %p369 = pneg %p368
    $region43: #{tpu_custom_call.1} parent=1 // pred_check_branch
      %371 = sbr.rel (%p369) target = $region45
    $region44: #{tpu_custom_call.1} parent=1 // pred_region
      %v372 = vld [vmem:[#allocation9] sm:$0x1]
      %v373 = vmul.f32 %v364, %v364
      %v374 = vmul.f32 %v365, %v365
      %v375 = vsel %vm125, %v373, 0.0
      %v376 = vsel %vm125, %v374, 0.0
      %v377 = vadd.f32 %v375, %v376
      %378 = vadd.xlane.f32.xlu0 %v377
      %v379 = vpop.xlane.xlu0 %378
      %v380 = vrot.slane %v379, 4
      %v381 = vadd.f32 %v379, %v380
      %v382 = vrot.slane %v381, 2
      %v383 = vadd.f32 %v381, %v382
      %v384 = vrot.slane %v383, 1
      %v385 = vadd.f32 %v383, %v384
      %s386 = vtos %v385
      %v387 = vstv %s386
      %v388 = vadd.f32 %v372, %v387
      %vm389 = vcmask 0
      %390 = vst.msk [vmem:[#allocation9] sm:$0x1] %vm389, %v388
    $region45: #{tpu_custom_call.1} parent=1 // pred_fallthru
      _
    %p391 = scmp.gt.s32.totalorder %s367, 15
    // Predicated region
    $region46: #{tpu_custom_call.1} parent=1 // pred_check
      %p392 = pneg %p391
    $region47: #{tpu_custom_call.1} parent=1 // pred_check_branch
      %394 = sbr.rel (%p392) target = $region49
    $region48: #{tpu_custom_call.1} parent=1 // pred_region
      %v395 = vlaneseq
      %v396 = vshrl.u32 %v395, 7
      %v397 = vadd.s32 %v396, 8
      %v398 = vstv %s366
      %v399 = vadd.s32 %v396, %v398
      %v400 = vadd.s32 %v397, %v398
      %vm401 = vcmp.lt.s32.totalorder %v399, 15
      %vm402 = vcmp.lt.s32.totalorder %v400, 15
      %v403 = vsel %vm401, 1, 0
      %v404 = vsel %vm402, 1, 0
      %v405 = vcvt.s32.f32 %v403
      %v406 = vcvt.s32.f32 %v404
      %v407 = vld [vmem:[#allocation9] sm:$0x1]
      %v408 = vmul.f32 %v364, %v364
      %v409 = vmul.f32 %v365, %v365
      %v410 = vmul.f32 %v408, %v405
      %v411 = vmul.f32 %v409, %v406
      %v412 = vsel %vm125, %v410, 0.0
      %v413 = vsel %vm125, %v411, 0.0
      %v414 = vadd.f32 %v412, %v413
      %415 = vadd.xlane.f32.xlu0 %v414
      %v416 = vpop.xlane.xlu0 %415
      %v417 = vrot.slane %v416, 4
      %v418 = vadd.f32 %v416, %v417
      %v419 = vrot.slane %v418, 2
      %v420 = vadd.f32 %v418, %v419
      %v421 = vrot.slane %v420, 1
      %v422 = vadd.f32 %v420, %v421
      %s423 = vtos %v422
      %v424 = vstv %s423
      %v425 = vadd.f32 %v407, %v424
      %vm426 = vcmask 0
      %427 = vst.msk [vmem:[#allocation9] sm:$0x1] %vm426, %v425
    $region49: #{tpu_custom_call.1} parent=1 // pred_fallthru
      _
    // Predicated region
    $region50: #{tpu_custom_call.1} parent=1 // pred_check
      %p428 = pneg %p56
    $region51: #{tpu_custom_call.1} parent=1 // pred_check_branch
      %430 = sbr.rel (%p428) target = $region53
    $region52: #{tpu_custom_call.1} parent=1 // pred_region
      %v431 = vld [vmem:[#allocation9] sm:$0x1]
      %v432 = vmul.f32 %v431, 0.008333334
      %vm433 = vcmask 0
      %434 = vst.msk [vmem:[#allocation9] sm:$0x1] %vm433, %v432
    $region53: #{tpu_custom_call.1} parent=1 // pred_fallthru
      _
    // Predicated region
    $region54: #{tpu_custom_call.1} parent=1 // pred_check
      _
    $region55: #{tpu_custom_call.1} parent=1 // pred_check_branch
      %436 = sbr.rel (0) target = $region57
    $region56: #{tpu_custom_call.1} parent=1 // pred_region
      %s438 = ssub.s32 16, 16
      %439 = vsyncadd [#allocation5], %s438
      %s441 = sshll.u32 [#allocation9], 4
      %s442 = int_to_ptr.vmem [resolvable:$true] %s441
      %444 = dma.vmem_to_hbm [thread:$0]  %s442, 16, %s7, [#allocation5]
    $region57: #{tpu_custom_call.1} parent=1 // pred_fallthru
      _
    // Predicated region
    $region58: #{tpu_custom_call.1} parent=1 // pred_check
      _
    $region59: #{tpu_custom_call.1} parent=1 // pred_check_branch
      %446 = sbr.rel (0) target = $region61
    $region60: #{tpu_custom_call.1} parent=1 // pred_region
      %s448 = ssub.s32 16, 16
      %449 = vsyncadd [#allocation11], %s448
      %s451 = sshll.u32 [#allocation10], 4
      %s452 = int_to_ptr.vmem [resolvable:$true] %s451
      %454 = dma.vmem_to_hbm [thread:$0]  %s452, 16, %s8, [#allocation11]
    $region61: #{tpu_custom_call.1} parent=1 // pred_fallthru
      _
    // Predicated region
    $region62: #{tpu_custom_call.1} parent=1 // pred_check
      _
    $region63: #{tpu_custom_call.1} parent=1 // pred_check_branch
      %456 = sbr.rel (0) target = $region65
    $region64: #{tpu_custom_call.1} parent=1 // pred_region
      %457 = dma.done [#allocation5], 16
    $region65: #{tpu_custom_call.1} parent=1 // pred_fallthru
      _
    // Predicated region
    $region66: #{tpu_custom_call.1} parent=1 // pred_check
      _
    $region67: #{tpu_custom_call.1} parent=1 // pred_check_branch
      %459 = sbr.rel (0) target = $region69
    $region68: #{tpu_custom_call.1} parent=1 // pred_region
      %460 = dma.done [#allocation11], 16
    $region69: #{tpu_custom_call.1} parent=1 // pred_fallthru
      _
    %461 = vsyncpa [#allocation5], 1
    %462 = vsyncpa [#allocation11], 1
    %463 = vsyncpa [#allocation6], 1
    %464 = vsyncpa [#allocation8], 1

</llo_original>
